<compile_context>
chip_gen: v7x
topology: tpu7x:2x2x1
jax: 0.10.0
libtpu: 0.0.40
codegen_flags: <defaults>
</compile_context>

<pallas_src>
import functools

import jax
import jax.numpy as jnp
from jax import lax
from jax.experimental import pallas as pl
from jax.experimental.pallas import tpu as pltpu


def _round_up(x: int, m: int) -> int:
    return ((x + m - 1) // m) * m


def _make_lse_kernel(has_pad: bool):
    """Flash-style row-wise logsumexp over tiled logits = img @ txt^T."""

    def kernel(*refs):
        if has_pad:
            img_ref, txt_ref, bias_ref, out_ref, m_sc, l_sc = refs
        else:
            img_ref, txt_ref, out_ref, m_sc, l_sc = refs
            bias_ref = None

        j = pl.program_id(1)           # text (reduction) tile
        nj = pl.num_programs(1)

        # Reset the online-logsumexp accumulators at the start of each row tile.
        @pl.when(j == 0)
        def _():
            m_sc[...] = jnp.full(m_sc.shape, -1e30, jnp.float32)
            l_sc[...] = jnp.zeros(l_sc.shape, jnp.float32)

        # One [tm, tm] logits tile on the MXU.  Inputs are already normalized,
        # scaled by 1/temperature and cast to the matmul dtype in the wrapper,
        # and the text side is pre-transposed to [Dp, tm] (NN matmul).
        s = jnp.dot(img_ref[...], txt_ref[...],
                    preferred_element_type=jnp.float32)

        # Padded text columns (only exist when has_pad): a single broadcast
        # add of a precomputed [1, tm] row of 0 / -1e30.
        if has_pad:
            s = s + bias_ref[...]

        # Online (flash-style) logsumexp over text tiles.
        m_prev = m_sc[...]
        m_new = jnp.maximum(m_prev, jnp.max(s, axis=-1, keepdims=True))
        alpha = jnp.exp(m_prev - m_new)
        l_sc[...] = alpha * l_sc[...] + jnp.sum(jnp.exp(s - m_new),
                                                axis=-1, keepdims=True)
        m_sc[...] = m_new

        # Finalize: per-row logsumexp.
        @pl.when(j == nj - 1)
        def _():
            out_ref[...] = m_sc[...] + jnp.log(l_sc[...])

    return kernel


def _default_block_rows(B: int, Dp: int, mm_bytes: int) -> int:
    """Pick the largest row/text tile that fits comfortably in scoped VMEM
    and still leaves >=2 row tiles for megacore / dual-TC splitting."""
    budget = 20 * 1024 * 1024  # conservative: fits v7x (32 MiB scoped) too
    tm = 512
    while tm > 128 and (4 * tm * Dp * mm_bytes + 4 * tm * tm * 4) > budget:
        tm -= 128
    if B > 128:
        tm = min(tm, _round_up((B + 1) // 2, 128))
    else:
        tm = 128
    return max(tm, 128)


@functools.partial(jax.jit,
                   static_argnames=("temperature", "block_rows",
                                    "use_bf16_matmul"))
def infonce_loss(image_embeds, text_embeds, temperature: float = 1.0,
                 block_rows: int | None = None, use_bf16_matmul: bool = True):
    """Pallas TPU implementation of InfoNCELoss.forward."""
    B, D = image_embeds.shape
    assert text_embeds.shape == (B, D)

    eps = 1e-12                       # F.normalize eps, via max(sumsq, eps^2)
    inv_temp = 1.0 / float(temperature)

    # --- hoisted O(B*D) work: normalize in f32, fold 1/temperature into the
    # --- image operand, and compute the positive (diagonal) term directly.
    img = image_embeds.astype(jnp.float32)
    txt = text_embeds.astype(jnp.float32)
    img_n = img * lax.rsqrt(jnp.maximum(jnp.sum(img * img, -1, keepdims=True),
                                        eps * eps))
    txt_n = txt * lax.rsqrt(jnp.maximum(jnp.sum(txt * txt, -1, keepdims=True),
                                        eps * eps))
    pos = jnp.sum(img_n * txt_n, axis=-1) * inv_temp      # [B], f32
    img_s = img_n * inv_temp

    # Matmul dtype: bf16 by default (f32 accumulation on the MXU); opt out
    # with use_bf16_matmul=False for exact f32 parity.
    if image_embeds.dtype == jnp.bfloat16 or use_bf16_matmul:
        mm_dtype = jnp.bfloat16
    else:
        mm_dtype = jnp.float32
    mm_bytes = jnp.dtype(mm_dtype).itemsize

    # --- tiling: lane-align D, tile B; padded rows are dropped, padded text
    # --- columns are masked via an additive bias row (only when needed).
    Dp = _round_up(D, 128)
    if block_rows is None:
        tm = _default_block_rows(B, Dp, mm_bytes)
    else:
        tm = _round_up(block_rows, 128)
    Bp = _round_up(B, tm)
    has_pad = Bp != B

    img_p, txt_p = img_s, txt_n
    if (Bp, Dp) != (B, D):
        img_p = jnp.pad(img_s, ((0, Bp - B), (0, Dp - D)))
        txt_p = jnp.pad(txt_n, ((0, Bp - B), (0, Dp - D)))
    img_p = img_p.astype(mm_dtype)
    txt_t = txt_p.astype(mm_dtype).T          # [Dp, Bp], NN matmul in-kernel

    n_tiles = Bp // tm

    inputs = [img_p, txt_t]
    in_specs = [
        pl.BlockSpec((tm, Dp), lambda i, j: (i, 0)),   # image rows
        pl.BlockSpec((Dp, tm), lambda i, j: (0, j)),   # text^T (reduction)
    ]
    if has_pad:
        bias = jnp.where(jnp.arange(Bp) < B, 0.0, -1e30)
        inputs.append(bias.astype(jnp.float32).reshape(1, Bp))
        in_specs.append(pl.BlockSpec((1, tm), lambda i, j: (0, j)))

    # Explicit VMEM limit (v5e defaults to ~16 MiB scoped VMEM).
    vmem_need = 4 * tm * Dp * mm_bytes + 4 * tm * tm * 4 + (1 << 20)
    vmem_limit = int(min(max(vmem_need + (8 << 20), 32 << 20), 48 << 20))

    lse = pl.pallas_call(
        _make_lse_kernel(has_pad),
        out_shape=jax.ShapeDtypeStruct((Bp, 1), jnp.float32),
        grid_spec=pltpu.PrefetchScalarGridSpec(
            num_scalar_prefetch=0,
            grid=(n_tiles, n_tiles),
            in_specs=in_specs,
            out_specs=pl.BlockSpec((tm, 1), lambda i, j: (i, 0)),
            scratch_shapes=[
                pltpu.VMEM((tm, 1), jnp.float32),   # running max
                pltpu.VMEM((tm, 1), jnp.float32),   # running sum-exp
            ],
        ),
        compiler_params=pltpu.CompilerParams(
            dimension_semantics=("parallel", "arbitrary"),
            vmem_limit_bytes=vmem_limit),
    )(*inputs)

    # Tiny final reduction: per-row CE in log domain, mean over valid rows.
    return jnp.mean(lse[:B, 0] - pos)


def _reference_infonce(image_embeds, text_embeds, temperature=1.0):
    """Pure-JAX reference mirroring the PyTorch module."""
    def _norm(x):
        n = jnp.sqrt(jnp.sum(x * x, axis=-1, keepdims=True))
        return x / jnp.maximum(n, 1e-12)

    img = _norm(image_embeds.astype(jnp.float32))
    txt = _norm(text_embeds.astype(jnp.float32))
    sim = (img @ txt.T) / temperature
    pos = jnp.diag(sim)
    return jnp.mean(-jnp.log(jnp.exp(pos) / jnp.sum(jnp.exp(sim), axis=-1)))


if __name__ == "__main__":
    key = jax.random.PRNGKey(0)
    k1, k2, k3, k4, k5, k6 = jax.random.split(key, 6)

    # Test 1: small shapes, small temperature, exact f32 MXU path.
    B, D = 8, 32
    img = jax.random.normal(k1, (B, D), dtype=jnp.float32)
    txt = jax.random.normal(k2, (B, D), dtype=jnp.float32)
    loss = jax.block_until_ready(
        infonce_loss(img, txt, 0.07, use_bf16_matmul=False))
    ref = _reference_infonce(img, txt, 0.07)
    assert jnp.allclose(loss, ref, rtol=2e-5, atol=1e-5), (loss, ref)

    # Test 2: non-aligned shapes with multiple row/text tiles (exercises the
    # additive padding bias, off-diagonal tiles and the online logsumexp),
    # default bf16 MXU path.
    B2, D2 = 200, 96
    img2 = jax.random.normal(k3, (B2, D2), dtype=jnp.float32)
    txt2 = jax.random.normal(k4, (B2, D2), dtype=jnp.float32)
    loss2 = jax.block_until_ready(infonce_loss(img2, txt2, 1.0, block_rows=128))
    ref2 = _reference_infonce(img2, txt2, 1.0)
    assert jnp.allclose(loss2, ref2, rtol=1e-2, atol=1e-2), (loss2, ref2)

    # Test 3: bf16 inputs (native bf16 operand path).
    B3, D3 = 64, 64
    img3 = jax.random.normal(k5, (B3, D3), dtype=jnp.bfloat16)
    txt3 = jax.random.normal(k6, (B3, D3), dtype=jnp.bfloat16)
    loss3 = jax.block_until_ready(infonce_loss(img3, txt3, 0.5))
    ref3 = _reference_infonce(img3, txt3, 0.5)
    assert jnp.allclose(loss3, ref3, rtol=2e-2, atol=2e-2), (loss3, ref3)

    print("KERNEL_OK")
</pallas_src>

<mosaic_0001>
module attributes {stable_mosaic.version = 11 : i64} {
  func.func @kernel(%arg0: i32, %arg1: i32, %arg2: memref<128x128xf32, #tpu.memory_space<vmem>>, %arg3: memref<128x128xf32, #tpu.memory_space<vmem>>, %arg4: memref<1x128xf32, #tpu.memory_space<vmem>>, %arg5: memref<128x1xf32, #tpu.memory_space<vmem>>, %arg6: memref<128x1xf32, #tpu.memory_space<vmem>>, %arg7: memref<128x1xf32, #tpu.memory_space<vmem>>) attributes {dimension_semantics = [#tpu.dimension_semantics<parallel>, #tpu.dimension_semantics<arbitrary>], iteration_bounds = array<i64: 1, 1>, scalar_prefetch = 0 : i64, scratch_operands = 2 : i64, tpu.core_type = #tpu.core_type<tc>, window_params = [{transform_indices = @transform_0, window_bounds = array<i64: 128, 128>}, {transform_indices = @transform_1, window_bounds = array<i64: 128, 128>}, {transform_indices = @transform_2, window_bounds = array<i64: 1, 128>}, {transform_indices = @transform_3, window_bounds = array<i64: 128, 1>}]} {
    %c0_i32 = arith.constant 0 : i32
    %0 = arith.cmpi eq, %arg1, %c0_i32 : i32
    %1 = arith.extui %0 : i1 to i32
    %c0_i32_0 = arith.constant 0 : i32
    %2 = arith.cmpi ne, %1, %c0_i32_0 : i32
    scf.if %2 {
      %cst_18 = arith.constant -1.000000e+30 : f32
      %28 = vector.broadcast %cst_18 : f32 to vector<128x1xf32>
      %c0_19 = arith.constant 0 : index
      %c0_20 = arith.constant 0 : index
      %29 = vector.load %arg6[%c0_19, %c0_20] : memref<128x1xf32, #tpu.memory_space<vmem>>, vector<128x1xf32>
      tpu.vector_store %arg6[%c0_19, %c0_20], %28 {strides = array<i32>} : memref<128x1xf32, #tpu.memory_space<vmem>>, vector<128x1xf32>,
      %cst_21 = arith.constant 0.000000e+00 : f32
      %30 = vector.broadcast %cst_21 : f32 to vector<128x1xf32>
      %c0_22 = arith.constant 0 : index
      %c0_23 = arith.constant 0 : index
      %31 = vector.load %arg7[%c0_22, %c0_23] : memref<128x1xf32, #tpu.memory_space<vmem>>, vector<128x1xf32>
      tpu.vector_store %arg7[%c0_22, %c0_23], %30 {strides = array<i32>} : memref<128x1xf32, #tpu.memory_space<vmem>>, vector<128x1xf32>,
    } else {
    }
    %c0 = arith.constant 0 : index
    %c0_1 = arith.constant 0 : index
    %3 = vector.load %arg2[%c0, %c0_1] : memref<128x128xf32, #tpu.memory_space<vmem>>, vector<128x128xf32>
    %c0_2 = arith.constant 0 : index
    %c0_3 = arith.constant 0 : index
    %4 = vector.load %arg3[%c0_2, %c0_3] : memref<128x128xf32, #tpu.memory_space<vmem>>, vector<128x128xf32>
    %cst = arith.constant dense<0.000000e+00> : vector<128x128xf32>
    %5 = tpu.matmul %3, %4, %cst {dimension_numbers = #tpu.dot_dimension_numbers<[1], [0], [0], [1], [0, 0, 1, 1], [], []>} : vector<128x128xf32>, vector<128x128xf32>, vector<128x128xf32> -> vector<128x128xf32>
    %c0_4 = arith.constant 0 : index
    %c0_5 = arith.constant 0 : index
    %6 = vector.load %arg4[%c0_4, %c0_5] : memref<1x128xf32, #tpu.memory_space<vmem>>, vector<1x128xf32>
    %7 = vector.broadcast %6 : vector<1x128xf32> to vector<128x128xf32>
    %8 = arith.addf %5, %7 : vector<128x128xf32>
    %c0_6 = arith.constant 0 : index
    %c0_7 = arith.constant 0 : index
    %9 = vector.load %arg6[%c0_6, %c0_7] : memref<128x1xf32, #tpu.memory_space<vmem>>, vector<128x1xf32>
    %cst_8 = arith.constant dense<0xFF800000> : vector<128xf32>
    %10 = vector.multi_reduction <maximumf>, %8, %cst_8 [1] : vector<128x128xf32> to vector<128xf32>
    %11 = vector.shape_cast %10 : vector<128xf32> to vector<128x1xf32>
    %12 = arith.maximumf %9, %11 : vector<128x1xf32>
    %13 = arith.subf %9, %12 : vector<128x1xf32>
    %14 = math.exp %13 : vector<128x1xf32>
    %c0_9 = arith.constant 0 : index
    %c0_10 = arith.constant 0 : index
    %15 = vector.load %arg7[%c0_9, %c0_10] : memref<128x1xf32, #tpu.memory_space<vmem>>, vector<128x1xf32>
    %16 = arith.mulf %14, %15 : vector<128x1xf32>
    %17 = vector.broadcast %12 : vector<128x1xf32> to vector<128x128xf32>
    %18 = arith.subf %8, %17 : vector<128x128xf32>
    %19 = math.exp %18 : vector<128x128xf32>
    %cst_11 = arith.constant dense<0.000000e+00> : vector<128xf32>
    %20 = vector.multi_reduction <add>, %19, %cst_11 [1] : vector<128x128xf32> to vector<128xf32>
    %21 = vector.shape_cast %20 : vector<128xf32> to vector<128x1xf32>
    %22 = arith.addf %16, %21 : vector<128x1xf32>
    %c0_12 = arith.constant 0 : index
    %c0_13 = arith.constant 0 : index
    %23 = vector.load %arg7[%c0_12, %c0_13] : memref<128x1xf32, #tpu.memory_space<vmem>>, vector<128x1xf32>
    tpu.vector_store %arg7[%c0_12, %c0_13], %22 {strides = array<i32>} : memref<128x1xf32, #tpu.memory_space<vmem>>, vector<128x1xf32>,
    %c0_14 = arith.constant 0 : index
    %c0_15 = arith.constant 0 : index
    %24 = vector.load %arg6[%c0_14, %c0_15] : memref<128x1xf32, #tpu.memory_space<vmem>>, vector<128x1xf32>
    tpu.vector_store %arg6[%c0_14, %c0_15], %12 {strides = array<i32>} : memref<128x1xf32, #tpu.memory_space<vmem>>, vector<128x1xf32>,
    %c0_i32_16 = arith.constant 0 : i32
    %25 = arith.cmpi eq, %arg1, %c0_i32_16 : i32
    %26 = arith.extui %25 : i1 to i32
    %c0_i32_17 = arith.constant 0 : i32
    %27 = arith.cmpi ne, %26, %c0_i32_17 : i32
    scf.if %27 {
      %c0_18 = arith.constant 0 : index
      %c0_19 = arith.constant 0 : index
      %28 = vector.load %arg6[%c0_18, %c0_19] : memref<128x1xf32, #tpu.memory_space<vmem>>, vector<128x1xf32>
      %c0_20 = arith.constant 0 : index
      %c0_21 = arith.constant 0 : index
      %29 = vector.load %arg7[%c0_20, %c0_21] : memref<128x1xf32, #tpu.memory_space<vmem>>, vector<128x1xf32>
      %30 = math.log %29 : vector<128x1xf32>
      %31 = arith.addf %28, %30 : vector<128x1xf32>
      %c0_22 = arith.constant 0 : index
      %c0_23 = arith.constant 0 : index
      %32 = vector.load %arg5[%c0_22, %c0_23] : memref<128x1xf32, #tpu.memory_space<vmem>>, vector<128x1xf32>
      tpu.vector_store %arg5[%c0_22, %c0_23], %31 {strides = array<i32>} : memref<128x1xf32, #tpu.memory_space<vmem>>, vector<128x1xf32>,
    } else {
    }
    return
  }
  func.func @transform_0(%arg0: i32, %arg1: i32) -> (i32, i32) {
    %c0_i32 = arith.constant 0 : i32
    %c0_i32_0 = arith.constant 0 : i32
    return %arg0, %c0_i32 : i32, i32
  }
  func.func @transform_1(%arg0: i32, %arg1: i32) -> (i32, i32) {
    %c0_i32 = arith.constant 0 : i32
    %c0_i32_0 = arith.constant 0 : i32
    return %c0_i32, %arg1 : i32, i32
  }
  func.func @transform_2(%arg0: i32, %arg1: i32) -> (i32, i32) {
    %c0_i32 = arith.constant 0 : i32
    %c0_i32_0 = arith.constant 0 : i32
    return %c0_i32, %arg1 : i32, i32
  }
  func.func @transform_3(%arg0: i32, %arg1: i32) -> (i32, i32) {
    %c0_i32 = arith.constant 0 : i32
    %c0_i32_0 = arith.constant 0 : i32
    return %arg0, %c0_i32 : i32, i32
  }
}

</mosaic_0001>

<llo_original>
// kernel: infonce_loss.1
$region0: #{infonce_loss.1}
  #allocation0 [shape = 'u32[]', space=smem, size = 0x4, offset = 0x4, fixed_abs, tag = 'smem constant byte address 0x4 - core index']
  #allocation1 [shape = 'u32[144,128]{1,0:T(1,128)}', space=vmem, size = 0x12000, scoped, tag = 'internal scratch']
  #allocation2 [shape = 'f32[128,1]{1,0:T(8,128)}', space=vmem, size = 0x10000, scoped, tag = 'scratch operand']
  #allocation3 [shape = 'f32[128,1]{1,0:T(8,128)}', space=vmem, size = 0x10000, scoped, tag = 'scratch operand']
  %s0 = inlined_call_operand.vmem [shape: f32[128,128], index: 0, kind: input, shape index: {}]
  %s1 = inlined_call_operand.vmem [shape: f32[128,128], index: 1, kind: input, shape index: {}]
  %s2 = inlined_call_operand.vmem [shape: f32[1,128], index: 2, kind: input, shape index: {}]
  %s3 = inlined_call_operand.vmem [shape: f32[128,1], index: 3, kind: output, shape index: {}]
  %s4 = sld [smem:[#allocation0]]
  $region30: #{infonce_loss.1} parent=0
    _
  %s6 = ssub.s32 1, %s4
  %s7 = scalar_select 0, %s6, %s4
  // Predicated region
  $region2: #{infonce_loss.1} parent=0 // pred_check
    _
  $region3: #{infonce_loss.1} parent=0 // pred_check_branch
    %9 = sbr.rel (0) target = $region5
  $region4: #{infonce_loss.1} parent=0 // pred_region
    _
  $region5: #{infonce_loss.1} parent=0 // pred_fallthru
    _
  // Predicated region
  $region6: #{infonce_loss.1} parent=0 // pred_check
    _
  $region7: #{infonce_loss.1} parent=0 // pred_check_branch
    %11 = sbr.rel (0) target = $region9
  $region8: #{infonce_loss.1} parent=0 // pred_region
    _
  $region9: #{infonce_loss.1} parent=0 // pred_fallthru
    _
  // Predicated region
  $region10: #{infonce_loss.1} parent=0 // pred_check
    _
  $region11: #{infonce_loss.1} parent=0 // pred_check_branch
    %13 = sbr.rel (0) target = $region13
  $region12: #{infonce_loss.1} parent=0 // pred_region
    _
  $region13: #{infonce_loss.1} parent=0 // pred_fallthru
    _
  %p14 = scmp.eq.s32.totalorder 0, 0
  // Predicated region
  $region14: #{infonce_loss.1} parent=0 // pred_check
    %p15 = pneg %p14
  $region15: #{infonce_loss.1} parent=0 // pred_check_branch
    %17 = sbr.rel (%p15) target = $region17
  $region16: #{infonce_loss.1} parent=0 // pred_region
    %vm18 = vcmask 7168
    %19 = vst.msk [vmem:[#allocation2] sm:$0xff] %vm18, -1e+30
    %20 = vst.msk [vmem:[#allocation2 + $0x8] sm:$0xff] %vm18, -1e+30
    %21 = vst.msk [vmem:[#allocation2 + $0x10] sm:$0xff] %vm18, -1e+30
    %22 = vst.msk [vmem:[#allocation2 + $0x18] sm:$0xff] %vm18, -1e+30
    %23 = vst.msk [vmem:[#allocation2 + $0x20] sm:$0xff] %vm18, -1e+30
    %24 = vst.msk [vmem:[#allocation2 + $0x28] sm:$0xff] %vm18, -1e+30
    %25 = vst.msk [vmem:[#allocation2 + $0x30] sm:$0xff] %vm18, -1e+30
    %26 = vst.msk [vmem:[#allocation2 + $0x38] sm:$0xff] %vm18, -1e+30
    %27 = vst.msk [vmem:[#allocation2 + $0x40] sm:$0xff] %vm18, -1e+30
    %28 = vst.msk [vmem:[#allocation2 + $0x48] sm:$0xff] %vm18, -1e+30
    %29 = vst.msk [vmem:[#allocation2 + $0x50] sm:$0xff] %vm18, -1e+30
    %30 = vst.msk [vmem:[#allocation2 + $0x58] sm:$0xff] %vm18, -1e+30
    %31 = vst.msk [vmem:[#allocation2 + $0x60] sm:$0xff] %vm18, -1e+30
    %32 = vst.msk [vmem:[#allocation2 + $0x68] sm:$0xff] %vm18, -1e+30
    %33 = vst.msk [vmem:[#allocation2 + $0x70] sm:$0xff] %vm18, -1e+30
    %34 = vst.msk [vmem:[#allocation2 + $0x78] sm:$0xff] %vm18, -1e+30
    %35 = vst.msk [vmem:[#allocation3] sm:$0xff] %vm18, 0.0
    %36 = vst.msk [vmem:[#allocation3 + $0x8] sm:$0xff] %vm18, 0.0
    %37 = vst.msk [vmem:[#allocation3 + $0x10] sm:$0xff] %vm18, 0.0
    %38 = vst.msk [vmem:[#allocation3 + $0x18] sm:$0xff] %vm18, 0.0
    %39 = vst.msk [vmem:[#allocation3 + $0x20] sm:$0xff] %vm18, 0.0
    %40 = vst.msk [vmem:[#allocation3 + $0x28] sm:$0xff] %vm18, 0.0
    %41 = vst.msk [vmem:[#allocation3 + $0x30] sm:$0xff] %vm18, 0.0
    %42 = vst.msk [vmem:[#allocation3 + $0x38] sm:$0xff] %vm18, 0.0
    %43 = vst.msk [vmem:[#allocation3 + $0x40] sm:$0xff] %vm18, 0.0
    %44 = vst.msk [vmem:[#allocation3 + $0x48] sm:$0xff] %vm18, 0.0
    %45 = vst.msk [vmem:[#allocation3 + $0x50] sm:$0xff] %vm18, 0.0
    %46 = vst.msk [vmem:[#allocation3 + $0x58] sm:$0xff] %vm18, 0.0
    %47 = vst.msk [vmem:[#allocation3 + $0x60] sm:$0xff] %vm18, 0.0
    %48 = vst.msk [vmem:[#allocation3 + $0x68] sm:$0xff] %vm18, 0.0
    %49 = vst.msk [vmem:[#allocation3 + $0x70] sm:$0xff] %vm18, 0.0
    %50 = vst.msk [vmem:[#allocation3 + $0x78] sm:$0xff] %vm18, 0.0
  $region17: #{infonce_loss.1} parent=0 // pred_fallthru
    _
  %v51 = vld [vmem:[%s0] sm:$0xff]
  %v52 = vld [vmem:[%s0 + $0x8] sm:$0xff]
  %v53 = vld [vmem:[%s0 + $0x10] sm:$0xff]
  %v54 = vld [vmem:[%s0 + $0x18] sm:$0xff]
  %v55 = vld [vmem:[%s0 + $0x20] sm:$0xff]
  %v56 = vld [vmem:[%s0 + $0x28] sm:$0xff]
  %v57 = vld [vmem:[%s0 + $0x30] sm:$0xff]
  %v58 = vld [vmem:[%s0 + $0x38] sm:$0xff]
  %v59 = vld [vmem:[%s0 + $0x40] sm:$0xff]
  %v60 = vld [vmem:[%s0 + $0x48] sm:$0xff]
  %v61 = vld [vmem:[%s0 + $0x50] sm:$0xff]
  %v62 = vld [vmem:[%s0 + $0x58] sm:$0xff]
  %v63 = vld [vmem:[%s0 + $0x60] sm:$0xff]
  %v64 = vld [vmem:[%s0 + $0x68] sm:$0xff]
  %v65 = vld [vmem:[%s0 + $0x70] sm:$0xff]
  %v66 = vld [vmem:[%s0 + $0x78] sm:$0xff]
  %v67 = vld [vmem:[%s1] sm:$0xff]
  %v68 = vld [vmem:[%s1 + $0x8] sm:$0xff]
  %v69 = vld [vmem:[%s1 + $0x10] sm:$0xff]
  %v70 = vld [vmem:[%s1 + $0x18] sm:$0xff]
  %v71 = vld [vmem:[%s1 + $0x20] sm:$0xff]
  %v72 = vld [vmem:[%s1 + $0x28] sm:$0xff]
  %v73 = vld [vmem:[%s1 + $0x30] sm:$0xff]
  %v74 = vld [vmem:[%s1 + $0x38] sm:$0xff]
  %v75 = vld [vmem:[%s1 + $0x40] sm:$0xff]
  %v76 = vld [vmem:[%s1 + $0x48] sm:$0xff]
  %v77 = vld [vmem:[%s1 + $0x50] sm:$0xff]
  %v78 = vld [vmem:[%s1 + $0x58] sm:$0xff]
  %v79 = vld [vmem:[%s1 + $0x60] sm:$0xff]
  %v80 = vld [vmem:[%s1 + $0x68] sm:$0xff]
  %v81 = vld [vmem:[%s1 + $0x70] sm:$0xff]
  %v82 = vld [vmem:[%s1 + $0x78] sm:$0xff]
  %v83 = vld [vmem:[%s2] sm:$0x1]
  %v85 = vlaneseq
  %v86 = vshrl.u32 %v85, 7
  %v87 = vsub.s32 0, %v86
  %v88 = vrot.slane %v83, %v87
  %90 = vmatprep.subr.mxu0 0.0
  %91 = vmatpush1.msra.mxu0 %v67
  %92 = vmatprep.subr.mxu0 0.0
  %93 = vmatpush1.msra.mxu0 %v68
  %94 = vmatprep.subr.mxu0 0.0
  %95 = vmatpush1.msra.mxu0 %v69
  %96 = vmatprep.subr.mxu0 0.0
  %97 = vmatpush1.msra.mxu0 %v70
  %98 = vmatprep.subr.mxu0 0.0
  %99 = vmatpush1.msra.mxu0 %v71
  %100 = vmatprep.subr.mxu0 0.0
  %101 = vmatpush1.msra.mxu0 %v72
  %102 = vmatprep.subr.mxu0 0.0
  %103 = vmatpush1.msra.mxu0 %v73
  %104 = vmatprep.subr.mxu0 0.0
  %105 = vmatpush1.msra.mxu0 %v74
  %106 = vmatprep.subr.mxu0 0.0
  %107 = vmatpush1.msra.mxu0 %v75
  %108 = vmatprep.subr.mxu0 0.0
  %109 = vmatpush1.msra.mxu0 %v76
  %110 = vmatprep.subr.mxu0 0.0
  %111 = vmatpush1.msra.mxu0 %v77
  %112 = vmatprep.subr.mxu0 0.0
  %113 = vmatpush1.msra.mxu0 %v78
  %114 = vmatprep.subr.mxu0 0.0
  %115 = vmatpush1.msra.mxu0 %v79
  %116 = vmatprep.subr.mxu0 0.0
  %117 = vmatpush1.msra.mxu0 %v80
  %118 = vmatprep.subr.mxu0 0.0
  %119 = vmatpush1.msra.mxu0 %v81
  %120 = vmatprep.subr.mxu0 0.0
  %121 = vmatpush1.msra.mxu0 %v82
  %122 = vmatprep.subr.mxu0 0.0
  %123 = vmatpush1.msra.mxu0 0.0
  %124 = vmatprep.subr.mxu0 0.0
  %125 = vmatpush1.msra.mxu0 0.0
  %126 = vmatprep.subr.mxu0 0.0
  %127 = vmatpush1.msra.mxu0 0.0
  %128 = vmatprep.subr.mxu0 0.0
  %129 = vmatpush1.msra.mxu0 0.0
  %130 = vmatprep.subr.mxu0 0.0
  %131 = vmatpush1.msra.mxu0 0.0
  %132 = vmatprep.subr.mxu0 0.0
  %133 = vmatpush1.msra.mxu0 0.0
  %134 = vmatprep.subr.mxu0 0.0
  %135 = vmatpush1.msra.mxu0 0.0
  %136 = vmatprep.subr.mxu0 0.0
  %137 = vmatpush1.msra.mxu0 0.0
  %138 = vmatprep.subr.mxu0 0.0
  %139 = vmatpush1.msra.mxu0 0.0
  %140 = vmatprep.subr.mxu0 0.0
  %141 = vmatpush1.msra.mxu0 0.0
  %142 = vmatprep.subr.mxu0 0.0
  %143 = vmatpush1.msra.mxu0 0.0
  %144 = vmatprep.subr.mxu0 0.0
  %145 = vmatpush1.msra.mxu0 0.0
  %146 = vmatprep.subr.mxu0 0.0
  %147 = vmatpush1.msra.mxu0 0.0
  %148 = vmatprep.subr.mxu0 0.0
  %149 = vmatpush1.msra.mxu0 0.0
  %150 = vmatprep.subr.mxu0 0.0
  %151 = vmatpush1.msra.mxu0 0.0
  %152 = vmatprep.subr.mxu0 0.0
  %153 = vmatpush1.msra.mxu0 0.0
  %154 = vmatprep.mubr.f32.mxu0 0.0
  %155 = vmatmul.mubr.f32.gmra.mrb[0].mxu0 %v51
  %v156 = vpop.f32.mrb[0].mxu0
  %v157 = vadd.f32 %v88, %v156
  %v158 = vpop.f32.mrb[0].mxu0
  %159 = vmatprep.mubr.f32.mxu0 0.0
  %160 = vmatmul.mubr.f32.gmra.mrb[0].mxu0 %v52
  %v161 = vpop.f32.mrb[0].mxu0
  %v162 = vadd.f32 %v88, %v161
  %v163 = vpop.f32.mrb[0].mxu0
  %164 = vmatprep.mubr.f32.mxu0 0.0
  %165 = vmatmul.mubr.f32.gmra.mrb[0].mxu0 %v53
  %v166 = vpop.f32.mrb[0].mxu0
  %v167 = vadd.f32 %v88, %v166
  %v168 = vpop.f32.mrb[0].mxu0
  %169 = vmatprep.mubr.f32.mxu0 0.0
  %170 = vmatmul.mubr.f32.gmra.mrb[0].mxu0 %v54
  %v171 = vpop.f32.mrb[0].mxu0
  %v172 = vadd.f32 %v88, %v171
  %v173 = vpop.f32.mrb[0].mxu0
  %174 = vmatprep.mubr.f32.mxu0 0.0
  %175 = vmatmul.mubr.f32.gmra.mrb[0].mxu0 %v55
  %v176 = vpop.f32.mrb[0].mxu0
  %v177 = vadd.f32 %v88, %v176
  %v178 = vpop.f32.mrb[0].mxu0
  %179 = vmatprep.mubr.f32.mxu0 0.0
  %180 = vmatmul.mubr.f32.gmra.mrb[0].mxu0 %v56
  %v181 = vpop.f32.mrb[0].mxu0
  %v182 = vadd.f32 %v88, %v181
  %v183 = vpop.f32.mrb[0].mxu0
  %184 = vmatprep.mubr.f32.mxu0 0.0
  %185 = vmatmul.mubr.f32.gmra.mrb[0].mxu0 %v57
  %v186 = vpop.f32.mrb[0].mxu0
  %v187 = vadd.f32 %v88, %v186
  %v188 = vpop.f32.mrb[0].mxu0
  %189 = vmatprep.mubr.f32.mxu0 0.0
  %190 = vmatmul.mubr.f32.gmra.mrb[0].mxu0 %v58
  %v191 = vpop.f32.mrb[0].mxu0
  %v192 = vadd.f32 %v88, %v191
  %v193 = vpop.f32.mrb[0].mxu0
  %194 = vmatprep.mubr.f32.mxu0 0.0
  %195 = vmatmul.mubr.f32.gmra.mrb[0].mxu0 %v59
  %v196 = vpop.f32.mrb[0].mxu0
  %v197 = vadd.f32 %v88, %v196
  %v198 = vpop.f32.mrb[0].mxu0
  %199 = vmatprep.mubr.f32.mxu0 0.0
  %200 = vmatmul.mubr.f32.gmra.mrb[0].mxu0 %v60
  %v201 = vpop.f32.mrb[0].mxu0
  %v202 = vadd.f32 %v88, %v201
  %v203 = vpop.f32.mrb[0].mxu0
  %204 = vmatprep.mubr.f32.mxu0 0.0
  %205 = vmatmul.mubr.f32.gmra.mrb[0].mxu0 %v61
  %v206 = vpop.f32.mrb[0].mxu0
  %v207 = vadd.f32 %v88, %v206
  %v208 = vpop.f32.mrb[0].mxu0
  %209 = vmatprep.mubr.f32.mxu0 0.0
  %210 = vmatmul.mubr.f32.gmra.mrb[0].mxu0 %v62
  %v211 = vpop.f32.mrb[0].mxu0
  %v212 = vadd.f32 %v88, %v211
  %v213 = vpop.f32.mrb[0].mxu0
  %214 = vmatprep.mubr.f32.mxu0 0.0
  %215 = vmatmul.mubr.f32.gmra.mrb[0].mxu0 %v63
  %v216 = vpop.f32.mrb[0].mxu0
  %v217 = vadd.f32 %v88, %v216
  %v218 = vpop.f32.mrb[0].mxu0
  %219 = vmatprep.mubr.f32.mxu0 0.0
  %220 = vmatmul.mubr.f32.gmra.mrb[0].mxu0 %v64
  %v221 = vpop.f32.mrb[0].mxu0
  %v222 = vadd.f32 %v88, %v221
  %v223 = vpop.f32.mrb[0].mxu0
  %224 = vmatprep.mubr.f32.mxu0 0.0
  %225 = vmatmul.mubr.f32.gmra.mrb[0].mxu0 %v65
  %v226 = vpop.f32.mrb[0].mxu0
  %v227 = vadd.f32 %v88, %v226
  %v228 = vpop.f32.mrb[0].mxu0
  %229 = vmatprep.mubr.f32.mxu0 0.0
  %230 = vmatmul.mubr.f32.gmra.mrb[0].mxu0 %v66
  %v231 = vpop.f32.mrb[0].mxu0
  %v232 = vadd.f32 %v88, %v231
  %v233 = vpop.f32.mrb[0].mxu0
  %234 = vdwg.mxu0
  %v235 = vld [vmem:[#allocation2] sm:$0xff]
  %v236 = vld [vmem:[#allocation2 + $0x8] sm:$0xff]
  %v237 = vld [vmem:[#allocation2 + $0x10] sm:$0xff]
  %v238 = vld [vmem:[#allocation2 + $0x18] sm:$0xff]
  %v239 = vld [vmem:[#allocation2 + $0x20] sm:$0xff]
  %v240 = vld [vmem:[#allocation2 + $0x28] sm:$0xff]
  %v241 = vld [vmem:[#allocation2 + $0x30] sm:$0xff]
  %v242 = vld [vmem:[#allocation2 + $0x38] sm:$0xff]
  %v243 = vld [vmem:[#allocation2 + $0x40] sm:$0xff]
  %v244 = vld [vmem:[#allocation2 + $0x48] sm:$0xff]
  %v245 = vld [vmem:[#allocation2 + $0x50] sm:$0xff]
  %v246 = vld [vmem:[#allocation2 + $0x58] sm:$0xff]
  %v247 = vld [vmem:[#allocation2 + $0x60] sm:$0xff]
  %v248 = vld [vmem:[#allocation2 + $0x68] sm:$0xff]
  %v249 = vld [vmem:[#allocation2 + $0x70] sm:$0xff]
  %v250 = vld [vmem:[#allocation2 + $0x78] sm:$0xff]
  %251 = vmax.xlane.f32.xlu0 %v157
  %v252 = vpop.xlane.xlu0 %251
  %253 = vmax.xlane.f32.xlu0 %v162
  %v254 = vpop.xlane.xlu0 %253
  %255 = vmax.xlane.f32.xlu0 %v167
  %v256 = vpop.xlane.xlu0 %255
  %257 = vmax.xlane.f32.xlu0 %v172
  %v258 = vpop.xlane.xlu0 %257
  %259 = vmax.xlane.f32.xlu0 %v177
  %v260 = vpop.xlane.xlu0 %259
  %261 = vmax.xlane.f32.xlu0 %v182
  %v262 = vpop.xlane.xlu0 %261
  %263 = vmax.xlane.f32.xlu0 %v187
  %v264 = vpop.xlane.xlu0 %263
  %265 = vmax.xlane.f32.xlu0 %v192
  %v266 = vpop.xlane.xlu0 %265
  %267 = vmax.xlane.f32.xlu0 %v197
  %v268 = vpop.xlane.xlu0 %267
  %269 = vmax.xlane.f32.xlu0 %v202
  %v270 = vpop.xlane.xlu0 %269
  %271 = vmax.xlane.f32.xlu0 %v207
  %v272 = vpop.xlane.xlu0 %271
  %273 = vmax.xlane.f32.xlu0 %v212
  %v274 = vpop.xlane.xlu0 %273
  %275 = vmax.xlane.f32.xlu0 %v217
  %v276 = vpop.xlane.xlu0 %275
  %277 = vmax.xlane.f32.xlu0 %v222
  %v278 = vpop.xlane.xlu0 %277
  %279 = vmax.xlane.f32.xlu0 %v227
  %v280 = vpop.xlane.xlu0 %279
  %281 = vmax.xlane.f32.xlu0 %v232
  %v282 = vpop.xlane.xlu0 %281
  %v283 = vmax.f32 %v235, %v252
  %v284 = vmax.f32 %v236, %v254
  %v285 = vmax.f32 %v237, %v256
  %v286 = vmax.f32 %v238, %v258
  %v287 = vmax.f32 %v239, %v260
  %v288 = vmax.f32 %v240, %v262
  %v289 = vmax.f32 %v241, %v264
  %v290 = vmax.f32 %v242, %v266
  %v291 = vmax.f32 %v243, %v268
  %v292 = vmax.f32 %v244, %v270
  %v293 = vmax.f32 %v245, %v272
  %v294 = vmax.f32 %v246, %v274
  %v295 = vmax.f32 %v247, %v276
  %v296 = vmax.f32 %v248, %v278
  %v297 = vmax.f32 %v249, %v280
  %v298 = vmax.f32 %v250, %v282
  %v299 = vsub.f32 %v235, %v283
  %v300 = vsub.f32 %v236, %v284
  %v301 = vsub.f32 %v237, %v285
  %v302 = vsub.f32 %v238, %v286
  %v303 = vsub.f32 %v239, %v287
  %v304 = vsub.f32 %v240, %v288
  %v305 = vsub.f32 %v241, %v289
  %v306 = vsub.f32 %v242, %v290
  %v307 = vsub.f32 %v243, %v291
  %v308 = vsub.f32 %v244, %v292
  %v309 = vsub.f32 %v245, %v293
  %v310 = vsub.f32 %v246, %v294
  %v311 = vsub.f32 %v247, %v295
  %v312 = vsub.f32 %v248, %v296
  %v313 = vsub.f32 %v249, %v297
  %v314 = vsub.f32 %v250, %v298
  %v315 = vmul.f32 %v299, 1.442695
  %v316 = vpow.pop %v315
  %v317 = vmul.f32 %v300, 1.442695
  %v318 = vpow.pop %v317
  %v319 = vmul.f32 %v301, 1.442695
  %v320 = vpow.pop %v319
  %v321 = vmul.f32 %v302, 1.442695
  %v322 = vpow.pop %v321
  %v323 = vmul.f32 %v303, 1.442695
  %v324 = vpow.pop %v323
  %v325 = vmul.f32 %v304, 1.442695
  %v326 = vpow.pop %v325
  %v327 = vmul.f32 %v305, 1.442695
  %v328 = vpow.pop %v327
  %v329 = vmul.f32 %v306, 1.442695
  %v330 = vpow.pop %v329
  %v331 = vmul.f32 %v307, 1.442695
  %v332 = vpow.pop %v331
  %v333 = vmul.f32 %v308, 1.442695
  %v334 = vpow.pop %v333
  %v335 = vmul.f32 %v309, 1.442695
  %v336 = vpow.pop %v335
  %v337 = vmul.f32 %v310, 1.442695
  %v338 = vpow.pop %v337
  %v339 = vmul.f32 %v311, 1.442695
  %v340 = vpow.pop %v339
  %v341 = vmul.f32 %v312, 1.442695
  %v342 = vpow.pop %v341
  %v343 = vmul.f32 %v313, 1.442695
  %v344 = vpow.pop %v343
  %v345 = vmul.f32 %v314, 1.442695
  %v346 = vpow.pop %v345
  %v347 = vld [vmem:[#allocation3] sm:$0xff]
  %v348 = vld [vmem:[#allocation3 + $0x8] sm:$0xff]
  %v349 = vld [vmem:[#allocation3 + $0x10] sm:$0xff]
  %v350 = vld [vmem:[#allocation3 + $0x18] sm:$0xff]
  %v351 = vld [vmem:[#allocation3 + $0x20] sm:$0xff]
  %v352 = vld [vmem:[#allocation3 + $0x28] sm:$0xff]
  %v353 = vld [vmem:[#allocation3 + $0x30] sm:$0xff]
  %v354 = vld [vmem:[#allocation3 + $0x38] sm:$0xff]
  %v355 = vld [vmem:[#allocation3 + $0x40] sm:$0xff]
  %v356 = vld [vmem:[#allocation3 + $0x48] sm:$0xff]
  %v357 = vld [vmem:[#allocation3 + $0x50] sm:$0xff]
  %v358 = vld [vmem:[#allocation3 + $0x58] sm:$0xff]
  %v359 = vld [vmem:[#allocation3 + $0x60] sm:$0xff]
  %v360 = vld [vmem:[#allocation3 + $0x68] sm:$0xff]
  %v361 = vld [vmem:[#allocation3 + $0x70] sm:$0xff]
  %v362 = vld [vmem:[#allocation3 + $0x78] sm:$0xff]
  %v363 = vmul.f32 %v316, %v347
  %v364 = vmul.f32 %v318, %v348
  %v365 = vmul.f32 %v320, %v349
  %v366 = vmul.f32 %v322, %v350
  %v367 = vmul.f32 %v324, %v351
  %v368 = vmul.f32 %v326, %v352
  %v369 = vmul.f32 %v328, %v353
  %v370 = vmul.f32 %v330, %v354
  %v371 = vmul.f32 %v332, %v355
  %v372 = vmul.f32 %v334, %v356
  %v373 = vmul.f32 %v336, %v357
  %v374 = vmul.f32 %v338, %v358
  %v375 = vmul.f32 %v340, %v359
  %v376 = vmul.f32 %v342, %v360
  %v377 = vmul.f32 %v344, %v361
  %v378 = vmul.f32 %v346, %v362
  %380 = vset.pattern.permute.xlu0 0
  %381 = vperm.xlu0 %380, %v283
  %v382 = vpop.permute.xlu0 %381
  %385 = vset.pattern.permute.xlu0 0
  %386 = vperm.xlu0 %385, %v284
  %v387 = vpop.permute.xlu0 %386
  %390 = vset.pattern.permute.xlu0 0
  %391 = vperm.xlu0 %390, %v285
  %v392 = vpop.permute.xlu0 %391
  %395 = vset.pattern.permute.xlu0 0
  %396 = vperm.xlu0 %395, %v286
  %v397 = vpop.permute.xlu0 %396
  %400 = vset.pattern.permute.xlu0 0
  %401 = vperm.xlu0 %400, %v287
  %v402 = vpop.permute.xlu0 %401
  %405 = vset.pattern.permute.xlu0 0
  %406 = vperm.xlu0 %405, %v288
  %v407 = vpop.permute.xlu0 %406
  %410 = vset.pattern.permute.xlu0 0
  %411 = vperm.xlu0 %410, %v289
  %v412 = vpop.permute.xlu0 %411
  %415 = vset.pattern.permute.xlu0 0
  %416 = vperm.xlu0 %415, %v290
  %v417 = vpop.permute.xlu0 %416
  %420 = vset.pattern.permute.xlu0 0
  %421 = vperm.xlu0 %420, %v291
  %v422 = vpop.permute.xlu0 %421
  %425 = vset.pattern.permute.xlu0 0
  %426 = vperm.xlu0 %425, %v292
  %v427 = vpop.permute.xlu0 %426
  %430 = vset.pattern.permute.xlu0 0
  %431 = vperm.xlu0 %430, %v293
  %v432 = vpop.permute.xlu0 %431
  %435 = vset.pattern.permute.xlu0 0
  %436 = vperm.xlu0 %435, %v294
  %v437 = vpop.permute.xlu0 %436
  %440 = vset.pattern.permute.xlu0 0
  %441 = vperm.xlu0 %440, %v295
  %v442 = vpop.permute.xlu0 %441
  %445 = vset.pattern.permute.xlu0 0
  %446 = vperm.xlu0 %445, %v296
  %v447 = vpop.permute.xlu0 %446
  %450 = vset.pattern.permute.xlu0 0
  %451 = vperm.xlu0 %450, %v297
  %v452 = vpop.permute.xlu0 %451
  %455 = vset.pattern.permute.xlu0 0
  %456 = vperm.xlu0 %455, %v298
  %v457 = vpop.permute.xlu0 %456
  %v459 = vsub.f32 %v157, %v382
  %v460 = vsub.f32 %v162, %v387
  %v461 = vsub.f32 %v167, %v392
  %v462 = vsub.f32 %v172, %v397
  %v463 = vsub.f32 %v177, %v402
  %v464 = vsub.f32 %v182, %v407
  %v465 = vsub.f32 %v187, %v412
  %v466 = vsub.f32 %v192, %v417
  %v467 = vsub.f32 %v197, %v422
  %v468 = vsub.f32 %v202, %v427
  %v469 = vsub.f32 %v207, %v432
  %v470 = vsub.f32 %v212, %v437
  %v471 = vsub.f32 %v217, %v442
  %v472 = vsub.f32 %v222, %v447
  %v473 = vsub.f32 %v227, %v452
  %v474 = vsub.f32 %v232, %v457
  %v475 = vmul.f32 %v459, 1.442695
  %v476 = vpow.pop %v475
  %v477 = vmul.f32 %v460, 1.442695
  %v478 = vpow.pop %v477
  %v479 = vmul.f32 %v461, 1.442695
  %v480 = vpow.pop %v479
  %v481 = vmul.f32 %v462, 1.442695
  %v482 = vpow.pop %v481
  %v483 = vmul.f32 %v463, 1.442695
  %v484 = vpow.pop %v483
  %v485 = vmul.f32 %v464, 1.442695
  %v486 = vpow.pop %v485
  %v487 = vmul.f32 %v465, 1.442695
  %v488 = vpow.pop %v487
  %v489 = vmul.f32 %v466, 1.442695
  %v490 = vpow.pop %v489
  %v491 = vmul.f32 %v467, 1.442695
  %v492 = vpow.pop %v491
  %v493 = vmul.f32 %v468, 1.442695
  %v494 = vpow.pop %v493
  %v495 = vmul.f32 %v469, 1.442695
  %v496 = vpow.pop %v495
  %v497 = vmul.f32 %v470, 1.442695
  %v498 = vpow.pop %v497
  %v499 = vmul.f32 %v471, 1.442695
  %v500 = vpow.pop %v499
  %v501 = vmul.f32 %v472, 1.442695
  %v502 = vpow.pop %v501
  %v503 = vmul.f32 %v473, 1.442695
  %v504 = vpow.pop %v503
  %v505 = vmul.f32 %v474, 1.442695
  %v506 = vpow.pop %v505
  %507 = vadd.xlane.f32.xlu0 %v476
  %v508 = vpop.xlane.xlu0 %507
  %509 = vadd.xlane.f32.xlu0 %v478
  %v510 = vpop.xlane.xlu0 %509
  %511 = vadd.xlane.f32.xlu0 %v480
  %v512 = vpop.xlane.xlu0 %511
  %513 = vadd.xlane.f32.xlu0 %v482
  %v514 = vpop.xlane.xlu0 %513
  %515 = vadd.xlane.f32.xlu0 %v484
  %v516 = vpop.xlane.xlu0 %515
  %517 = vadd.xlane.f32.xlu0 %v486
  %v518 = vpop.xlane.xlu0 %517
  %519 = vadd.xlane.f32.xlu0 %v488
  %v520 = vpop.xlane.xlu0 %519
  %521 = vadd.xlane.f32.xlu0 %v490
  %v522 = vpop.xlane.xlu0 %521
  %523 = vadd.xlane.f32.xlu0 %v492
  %v524 = vpop.xlane.xlu0 %523
  %525 = vadd.xlane.f32.xlu0 %v494
  %v526 = vpop.xlane.xlu0 %525
  %527 = vadd.xlane.f32.xlu0 %v496
  %v528 = vpop.xlane.xlu0 %527
  %529 = vadd.xlane.f32.xlu0 %v498
  %v530 = vpop.xlane.xlu0 %529
  %531 = vadd.xlane.f32.xlu0 %v500
  %v532 = vpop.xlane.xlu0 %531
  %533 = vadd.xlane.f32.xlu0 %v502
  %v534 = vpop.xlane.xlu0 %533
  %535 = vadd.xlane.f32.xlu0 %v504
  %v536 = vpop.xlane.xlu0 %535
  %537 = vadd.xlane.f32.xlu0 %v506
  %v538 = vpop.xlane.xlu0 %537
  %v539 = vadd.f32 %v363, %v508
  %v540 = vadd.f32 %v364, %v510
  %v541 = vadd.f32 %v365, %v512
  %v542 = vadd.f32 %v366, %v514
  %v543 = vadd.f32 %v367, %v516
  %v544 = vadd.f32 %v368, %v518
  %v545 = vadd.f32 %v369, %v520
  %v546 = vadd.f32 %v370, %v522
  %v547 = vadd.f32 %v371, %v524
  %v548 = vadd.f32 %v372, %v526
  %v549 = vadd.f32 %v373, %v528
  %v550 = vadd.f32 %v374, %v530
  %v551 = vadd.f32 %v375, %v532
  %v552 = vadd.f32 %v376, %v534
  %v553 = vadd.f32 %v377, %v536
  %v554 = vadd.f32 %v378, %v538
  %vm555 = vcmask 7168
  %556 = vst.msk [vmem:[#allocation3] sm:$0xff] %vm555, %v539
  %557 = vst.msk [vmem:[#allocation3 + $0x8] sm:$0xff] %vm555, %v540
  %558 = vst.msk [vmem:[#allocation3 + $0x10] sm:$0xff] %vm555, %v541
  %559 = vst.msk [vmem:[#allocation3 + $0x18] sm:$0xff] %vm555, %v542
  %560 = vst.msk [vmem:[#allocation3 + $0x20] sm:$0xff] %vm555, %v543
  %561 = vst.msk [vmem:[#allocation3 + $0x28] sm:$0xff] %vm555, %v544
  %562 = vst.msk [vmem:[#allocation3 + $0x30] sm:$0xff] %vm555, %v545
  %563 = vst.msk [vmem:[#allocation3 + $0x38] sm:$0xff] %vm555, %v546
  %564 = vst.msk [vmem:[#allocation3 + $0x40] sm:$0xff] %vm555, %v547
  %565 = vst.msk [vmem:[#allocation3 + $0x48] sm:$0xff] %vm555, %v548
  %566 = vst.msk [vmem:[#allocation3 + $0x50] sm:$0xff] %vm555, %v549
  %567 = vst.msk [vmem:[#allocation3 + $0x58] sm:$0xff] %vm555, %v550
  %568 = vst.msk [vmem:[#allocation3 + $0x60] sm:$0xff] %vm555, %v551
  %569 = vst.msk [vmem:[#allocation3 + $0x68] sm:$0xff] %vm555, %v552
  %570 = vst.msk [vmem:[#allocation3 + $0x70] sm:$0xff] %vm555, %v553
  %571 = vst.msk [vmem:[#allocation3 + $0x78] sm:$0xff] %vm555, %v554
  %572 = vst.msk [vmem:[#allocation2] sm:$0xff] %vm555, %v283
  %573 = vst.msk [vmem:[#allocation2 + $0x8] sm:$0xff] %vm555, %v284
  %574 = vst.msk [vmem:[#allocation2 + $0x10] sm:$0xff] %vm555, %v285
  %575 = vst.msk [vmem:[#allocation2 + $0x18] sm:$0xff] %vm555, %v286
  %576 = vst.msk [vmem:[#allocation2 + $0x20] sm:$0xff] %vm555, %v287
  %577 = vst.msk [vmem:[#allocation2 + $0x28] sm:$0xff] %vm555, %v288
  %578 = vst.msk [vmem:[#allocation2 + $0x30] sm:$0xff] %vm555, %v289
  %579 = vst.msk [vmem:[#allocation2 + $0x38] sm:$0xff] %vm555, %v290
  %580 = vst.msk [vmem:[#allocation2 + $0x40] sm:$0xff] %vm555, %v291
  %581 = vst.msk [vmem:[#allocation2 + $0x48] sm:$0xff] %vm555, %v292
  %582 = vst.msk [vmem:[#allocation2 + $0x50] sm:$0xff] %vm555, %v293
  %583 = vst.msk [vmem:[#allocation2 + $0x58] sm:$0xff] %vm555, %v294
  %584 = vst.msk [vmem:[#allocation2 + $0x60] sm:$0xff] %vm555, %v295
  %585 = vst.msk [vmem:[#allocation2 + $0x68] sm:$0xff] %vm555, %v296
  %586 = vst.msk [vmem:[#allocation2 + $0x70] sm:$0xff] %vm555, %v297
  %587 = vst.msk [vmem:[#allocation2 + $0x78] sm:$0xff] %vm555, %v298
  // Predicated region
  $region18: #{infonce_loss.1} parent=0 // pred_check
    %p588 = pneg %p14
  $region19: #{infonce_loss.1} parent=0 // pred_check_branch
    %590 = sbr.rel (%p588) target = $region21
  $region20: #{infonce_loss.1} parent=0 // pred_region
    %v591 = vld [vmem:[#allocation2] sm:$0xff]
    %v592 = vld [vmem:[#allocation2 + $0x8] sm:$0xff]
    %v593 = vld [vmem:[#allocation2 + $0x10] sm:$0xff]
    %v594 = vld [vmem:[#allocation2 + $0x18] sm:$0xff]
    %v595 = vld [vmem:[#allocation2 + $0x20] sm:$0xff]
    %v596 = vld [vmem:[#allocation2 + $0x28] sm:$0xff]
    %v597 = vld [vmem:[#allocation2 + $0x30] sm:$0xff]
    %v598 = vld [vmem:[#allocation2 + $0x38] sm:$0xff]
    %v599 = vld [vmem:[#allocation2 + $0x40] sm:$0xff]
    %v600 = vld [vmem:[#allocation2 + $0x48] sm:$0xff]
    %v601 = vld [vmem:[#allocation2 + $0x50] sm:$0xff]
    %v602 = vld [vmem:[#allocation2 + $0x58] sm:$0xff]
    %v603 = vld [vmem:[#allocation2 + $0x60] sm:$0xff]
    %v604 = vld [vmem:[#allocation2 + $0x68] sm:$0xff]
    %v605 = vld [vmem:[#allocation2 + $0x70] sm:$0xff]
    %v606 = vld [vmem:[#allocation2 + $0x78] sm:$0xff]
    %v607 = vld [vmem:[#allocation3] sm:$0xff]
    %v608 = vld [vmem:[#allocation3 + $0x8] sm:$0xff]
    %v609 = vld [vmem:[#allocation3 + $0x10] sm:$0xff]
    %v610 = vld [vmem:[#allocation3 + $0x18] sm:$0xff]
    %v611 = vld [vmem:[#allocation3 + $0x20] sm:$0xff]
    %v612 = vld [vmem:[#allocation3 + $0x28] sm:$0xff]
    %v613 = vld [vmem:[#allocation3 + $0x30] sm:$0xff]
    %v614 = vld [vmem:[#allocation3 + $0x38] sm:$0xff]
    %v615 = vld [vmem:[#allocation3 + $0x40] sm:$0xff]
    %v616 = vld [vmem:[#allocation3 + $0x48] sm:$0xff]
    %v617 = vld [vmem:[#allocation3 + $0x50] sm:$0xff]
    %v618 = vld [vmem:[#allocation3 + $0x58] sm:$0xff]
    %v619 = vld [vmem:[#allocation3 + $0x60] sm:$0xff]
    %v620 = vld [vmem:[#allocation3 + $0x68] sm:$0xff]
    %v621 = vld [vmem:[#allocation3 + $0x70] sm:$0xff]
    %v622 = vld [vmem:[#allocation3 + $0x78] sm:$0xff]
    %v623 = vlog2.pop %v607
    %v624 = vmul.f32 %v623, 0.6931472
    %v625 = vlog2.pop %v608
    %v626 = vmul.f32 %v625, 0.6931472
    %v627 = vlog2.pop %v609
    %v628 = vmul.f32 %v627, 0.6931472
    %v629 = vlog2.pop %v610
    %v630 = vmul.f32 %v629, 0.6931472
    %v631 = vlog2.pop %v611
    %v632 = vmul.f32 %v631, 0.6931472
    %v633 = vlog2.pop %v612
    %v634 = vmul.f32 %v633, 0.6931472
    %v635 = vlog2.pop %v613
    %v636 = vmul.f32 %v635, 0.6931472
    %v637 = vlog2.pop %v614
    %v638 = vmul.f32 %v637, 0.6931472
    %v639 = vlog2.pop %v615
    %v640 = vmul.f32 %v639, 0.6931472
    %v641 = vlog2.pop %v616
    %v642 = vmul.f32 %v641, 0.6931472
    %v643 = vlog2.pop %v617
    %v644 = vmul.f32 %v643, 0.6931472
    %v645 = vlog2.pop %v618
    %v646 = vmul.f32 %v645, 0.6931472
    %v647 = vlog2.pop %v619
    %v648 = vmul.f32 %v647, 0.6931472
    %v649 = vlog2.pop %v620
    %v650 = vmul.f32 %v649, 0.6931472
    %v651 = vlog2.pop %v621
    %v652 = vmul.f32 %v651, 0.6931472
    %v653 = vlog2.pop %v622
    %v654 = vmul.f32 %v653, 0.6931472
    %v655 = vadd.f32 %v591, %v624
    %v656 = vadd.f32 %v592, %v626
    %v657 = vadd.f32 %v593, %v628
    %v658 = vadd.f32 %v594, %v630
    %v659 = vadd.f32 %v595, %v632
    %v660 = vadd.f32 %v596, %v634
    %v661 = vadd.f32 %v597, %v636
    %v662 = vadd.f32 %v598, %v638
    %v663 = vadd.f32 %v599, %v640
    %v664 = vadd.f32 %v600, %v642
    %v665 = vadd.f32 %v601, %v644
    %v666 = vadd.f32 %v602, %v646
    %v667 = vadd.f32 %v603, %v648
    %v668 = vadd.f32 %v604, %v650
    %v669 = vadd.f32 %v605, %v652
    %v670 = vadd.f32 %v606, %v654
    %671 = vst.msk [vmem:[%s3] sm:$0xff] %vm555, %v655
    %672 = vst.msk [vmem:[%s3 + $0x8] sm:$0xff] %vm555, %v656
    %673 = vst.msk [vmem:[%s3 + $0x10] sm:$0xff] %vm555, %v657
    %674 = vst.msk [vmem:[%s3 + $0x18] sm:$0xff] %vm555, %v658
    %675 = vst.msk [vmem:[%s3 + $0x20] sm:$0xff] %vm555, %v659
    %676 = vst.msk [vmem:[%s3 + $0x28] sm:$0xff] %vm555, %v660
    %677 = vst.msk [vmem:[%s3 + $0x30] sm:$0xff] %vm555, %v661
    %678 = vst.msk [vmem:[%s3 + $0x38] sm:$0xff] %vm555, %v662
    %679 = vst.msk [vmem:[%s3 + $0x40] sm:$0xff] %vm555, %v663
    %680 = vst.msk [vmem:[%s3 + $0x48] sm:$0xff] %vm555, %v664
    %681 = vst.msk [vmem:[%s3 + $0x50] sm:$0xff] %vm555, %v665
    %682 = vst.msk [vmem:[%s3 + $0x58] sm:$0xff] %vm555, %v666
    %683 = vst.msk [vmem:[%s3 + $0x60] sm:$0xff] %vm555, %v667
    %684 = vst.msk [vmem:[%s3 + $0x68] sm:$0xff] %vm555, %v668
    %685 = vst.msk [vmem:[%s3 + $0x70] sm:$0xff] %vm555, %v669
    %686 = vst.msk [vmem:[%s3 + $0x78] sm:$0xff] %vm555, %v670
  $region21: #{infonce_loss.1} parent=0 // pred_fallthru
    _
  // Predicated region
  $region22: #{infonce_loss.1} parent=0 // pred_check
    _
  $region23: #{infonce_loss.1} parent=0 // pred_check_branch
    %688 = sbr.rel (0) target = $region25
  $region24: #{infonce_loss.1} parent=0 // pred_region
    _
  $region25: #{infonce_loss.1} parent=0 // pred_fallthru
    _
  // Predicated region
  $region26: #{infonce_loss.1} parent=0 // pred_check
    _
  $region27: #{infonce_loss.1} parent=0 // pred_check_branch
    %690 = sbr.rel (0) target = $region29
  $region28: #{infonce_loss.1} parent=0 // pred_region
    _
  $region29: #{infonce_loss.1} parent=0 // pred_fallthru
    _

</llo_original>
